<compile_context>
chip_gen: v6e
topology: v6e:2x2x1
jax: 0.10.0
libtpu: 0.0.40
codegen_flags: <defaults>
</compile_context>

<pallas_src>
import jax
import jax.numpy as jnp
from jax.experimental import pallas as pl
from jax.experimental.pallas import tpu as pltpu

LANE = 128      # feature dims padded to a multiple of the lane width
SUBLANE = 8     # batch tiles must be a multiple of the sublane count


def _round_up(x, m):
    return ((x + m - 1) // m) * m


def _vmem_capacity_bytes():
    """Physical VMEM for the current TPU generation (fallback: 128 MiB)."""
    try:
        return int(pltpu.get_tpu_info().vmem_capacity_bytes)
    except Exception:
        return 128 * 1024 * 1024


# --------------------------------------------------------------------------- #
# Kernel
# --------------------------------------------------------------------------- #
def decoder_mlp_kernel(x_ref, w1_ref, b1_ref, w2_ref, b2_ref, w3_ref, b3_ref, o_ref):
    """Fused MLP: lrelu(lrelu(lrelu(x@W1+b1)@W2+b2)@W3+b3) on one batch tile."""

    def lrelu(v):  # LeakyReLU(0.1): single vmax (slope < 1 => max(v, 0.1v) == where(v>0,v,0.1v))
        return jnp.maximum(v, 0.1 * v)

    x = x_ref[...]                                                       # (tile_b, D_in_p) bf16
    h1 = jnp.dot(x, w1_ref[...], preferred_element_type=jnp.float32) + b1_ref[...]
    h1 = lrelu(h1).astype(jnp.bfloat16)                                  # dropout (eval) = identity
    h2 = jnp.dot(h1, w2_ref[...], preferred_element_type=jnp.float32) + b2_ref[...]
    h2 = lrelu(h2).astype(jnp.bfloat16)                                  # dropout (eval) = identity
    h3 = jnp.dot(h2, w3_ref[...], preferred_element_type=jnp.float32) + b3_ref[...]
    o_ref[...] = lrelu(h3).astype(o_ref.dtype)                           # bf16 store (lane-dense)


# --------------------------------------------------------------------------- #
# One-time parameter preparation (hoisted out of the per-call wrapper)
# --------------------------------------------------------------------------- #
def prepare_params(params):
    """Pad feature dims to multiples of 128 and cast weights to bf16 (biases stay f32).

    Call once and reuse the result across forward calls; this is the weight-reformat
    HBM traffic that should NOT be paid per call.
    """
    w1, b1 = params["w1"], params["b1"]
    w2, b2 = params["w2"], params["b2"]
    w3, b3 = params["w3"], params["b3"]
    D_in, H1 = w1.shape
    H2, D_out = w2.shape[1], w3.shape[1]

    D_in_p = _round_up(D_in, LANE)
    H1_p = _round_up(H1, LANE)
    H2_p = _round_up(H2, LANE)
    D_out_p = _round_up(D_out, LANE)

    def pad2(a, rows, cols, dtype):
        a = a.astype(dtype)
        if a.shape == (rows, cols):
            return a
        return jnp.zeros((rows, cols), dtype).at[: a.shape[0], : a.shape[1]].set(a)

    return {
        "w1": pad2(w1, D_in_p, H1_p, jnp.bfloat16),
        "b1": pad2(b1, 1, H1_p, jnp.float32),
        "w2": pad2(w2, H1_p, H2_p, jnp.bfloat16),
        "b2": pad2(b2, 1, H2_p, jnp.float32),
        "w3": pad2(w3, H2_p, D_out_p, jnp.bfloat16),
        "b3": pad2(b3, 1, D_out_p, jnp.float32),
        "dims": (D_in, H1, H2, D_out),
    }


# --------------------------------------------------------------------------- #
# Forward wrapper
# --------------------------------------------------------------------------- #
def decoder_mlp(x, prepared, *, tile_b=None, single_buffer_weights=True):
    """x: (B, input_size). prepared: output of prepare_params()."""
    B, D_in = x.shape
    D_in_logical, H1, H2, D_out = prepared["dims"]
    assert D_in == D_in_logical, (D_in, D_in_logical)

    w1p, b1p = prepared["w1"], prepared["b1"]
    w2p, b2p = prepared["w2"], prepared["b2"]
    w3p, b3p = prepared["w3"], prepared["b3"]
    D_in_p, H1_p = w1p.shape
    H2_p, D_out_p = w3p.shape[0], w3p.shape[1]

    # ---- generation-aware VMEM budget ------------------------------------
    vmem_cap = _vmem_capacity_bytes()                        # 128 MiB v5e/v6e, 64 MiB v7x
    wbuf = 1 if single_buffer_weights else 2
    weight_bytes = (w1p.size + w2p.size + w3p.size) * 2 + (b1p.size + b2p.size + b3p.size) * 4

    def footprint(tb):
        io_bytes = 2 * tb * D_in_p * 2 + 2 * tb * D_out_p * 2    # double-buffered bf16 x / out
        inter_bytes = tb * (H1_p + H2_p) * (4 + 2)               # f32 + bf16 copies of h1/h2
        return wbuf * weight_bytes + io_bytes + inter_bytes

    # ---- batch tile selection (prefer 256-multiples for the 256-wide MXU) -
    if tile_b is None:
        tile_b = _round_up(min(B, 128), SUBLANE)
        for cand in (512, 256, 128):
            if B >= cand and footprint(cand) < 0.7 * vmem_cap:
                tile_b = cand
                break
    assert tile_b % SUBLANE == 0, "tile_b must be a multiple of 8 (ideally 128/256/512)"
    Bp = _round_up(B, tile_b)
    grid = (Bp // tile_b,)

    vmem_need = footprint(tile_b)
    vmem_limit = min(max(int(1.5 * vmem_need), 16 * 1024 * 1024), int(0.8 * vmem_cap))
    # TODO(synk): if wbuf*weight_bytes approaches ~40 MiB on v7x (64 MiB VMEM), split the
    # fusion (tile W2/W3 over N with a second grid axis, or two pallas_calls).

    # ---- input padding only when needed (avoid extra HBM passes) ----------
    if Bp == B and D_in_p == D_in:
        xp = x.astype(jnp.bfloat16)
    else:
        xp = jnp.zeros((Bp, D_in_p), jnp.bfloat16).at[:B, :D_in].set(x.astype(jnp.bfloat16))

    def _const_spec(shape):
        # Grid-invariant operands: single-buffer to halve their resident VMEM.
        if single_buffer_weights:
            return pl.BlockSpec(shape, lambda i: (0, 0), pipeline_mode=pl.Buffered(1))
        return pl.BlockSpec(shape, lambda i: (0, 0))

    flops = 2 * Bp * (D_in_p * H1_p + H1_p * H2_p + H2_p * D_out_p)
    bytes_accessed = xp.size * 2 + weight_bytes + Bp * D_out_p * 2
    cost = pl.CostEstimate(flops=flops, transcendentals=0, bytes_accessed=bytes_accessed)

    out = pl.pallas_call(
        decoder_mlp_kernel,
        out_shape=jax.ShapeDtypeStruct((Bp, D_out_p), jnp.bfloat16),
        grid_spec=pltpu.PrefetchScalarGridSpec(
            num_scalar_prefetch=0,
            grid=grid,
            in_specs=[
                pl.BlockSpec((tile_b, D_in_p), lambda i: (i, 0)),   # x: tiled over batch
                _const_spec(w1p.shape), _const_spec(b1p.shape),
                _const_spec(w2p.shape), _const_spec(b2p.shape),
                _const_spec(w3p.shape), _const_spec(b3p.shape),
            ],
            out_specs=pl.BlockSpec((tile_b, D_out_p), lambda i: (i, 0)),
        ),
        compiler_params=pltpu.CompilerParams(
            # Batch axis is embarrassingly parallel -> megacore sharding on v7x (2 TCs).
            dimension_semantics=("parallel",),
            vmem_limit_bytes=vmem_limit,
        ),
        cost_estimate=cost,
    )(xp, w1p, b1p, w2p, b2p, w3p, b3p)

    # ---- slice only when padding was added (padded rows hold lrelu(bias) garbage) ----
    if Bp != B or D_out_p != D_out:
        out = out[:B, :D_out]
    return out.astype(x.dtype)


# --------------------------------------------------------------------------- #
# Synthetic init + pure-JAX reference
# --------------------------------------------------------------------------- #
def init_params(key, input_size, output_size, dtype=jnp.float32):
    """Synthetic init matching nn.Linear shapes (weights stored transposed as (in, out))."""
    h1 = input_size * 4
    h2 = input_size * 2
    ks = jax.random.split(key, 6)

    def uniform(k, shape, fan_in):
        bound = 1.0 / jnp.sqrt(fan_in)
        return jax.random.uniform(k, shape, dtype, -bound, bound)

    return {
        "w1": uniform(ks[0], (input_size, h1), input_size),
        "b1": uniform(ks[1], (1, h1), input_size),
        "w2": uniform(ks[2], (h1, h2), h1),
        "b2": uniform(ks[3], (1, h2), h1),
        "w3": uniform(ks[4], (h2, output_size), h2),
        "b3": uniform(ks[5], (1, output_size), h2),
    }


def reference_mlp(x, p):
    lrelu = lambda v: jnp.where(v > 0, v, 0.1 * v)
    h = lrelu(x @ p["w1"] + p["b1"])
    h = lrelu(h @ p["w2"] + p["b2"])
    return lrelu(h @ p["w3"] + p["b3"])


if __name__ == "__main__":
    key = jax.random.PRNGKey(0)
    k_params, k_x = jax.random.split(key)

    batch = 64
    input_size = 32
    output_size = 16

    params = init_params(k_params, input_size, output_size)
    x = jax.random.normal(k_x, (batch, input_size), jnp.float32)

    prepared = prepare_params(params)   # one-time weight padding / bf16 cast

    try:
        out = jax.block_until_ready(decoder_mlp(x, prepared))
    except Exception:
        # Fallback for jax versions that reject single-buffered (Buffered(1)) BlockSpecs.
        out = jax.block_until_ready(decoder_mlp(x, prepared, single_buffer_weights=False))

    ref = reference_mlp(x, params)
    assert out.shape == (batch, output_size), out.shape
    # bf16 MXU inputs + bf16 output store vs a pure-f32 reference -> loose tolerance.
    max_err = float(jnp.max(jnp.abs(out - ref)))
    assert max_err < 5e-2, max_err

    print("KERNEL_OK")
</pallas_src>

<mosaic_0001>
module attributes {stable_mosaic.version = 11 : i64} {
  func.func @decoder_mlp_kernel(%arg0: i32, %arg1: memref<64x128xbf16, #tpu.memory_space<vmem>>, %arg2: memref<128x128xbf16, #tpu.memory_space<vmem>>, %arg3: memref<1x128xf32, #tpu.memory_space<vmem>>, %arg4: memref<128x128xbf16, #tpu.memory_space<vmem>>, %arg5: memref<1x128xf32, #tpu.memory_space<vmem>>, %arg6: memref<128x128xbf16, #tpu.memory_space<vmem>>, %arg7: memref<1x128xf32, #tpu.memory_space<vmem>>, %arg8: memref<64x128xbf16, #tpu.memory_space<vmem>>) attributes {dimension_semantics = [#tpu.dimension_semantics<parallel>], iteration_bounds = array<i64: 1>, scalar_prefetch = 0 : i64, scratch_operands = 0 : i64, tpu.core_type = #tpu.core_type<tc>, window_params = [{transform_indices = @transform_0, window_bounds = array<i64: 64, 128>}, {pipeline_mode = #tpu.pipeline_mode<synchronous>, transform_indices = @transform_1, window_bounds = array<i64: 128, 128>}, {pipeline_mode = #tpu.pipeline_mode<synchronous>, transform_indices = @transform_2, window_bounds = array<i64: 1, 128>}, {pipeline_mode = #tpu.pipeline_mode<synchronous>, transform_indices = @transform_3, window_bounds = array<i64: 128, 128>}, {pipeline_mode = #tpu.pipeline_mode<synchronous>, transform_indices = @transform_4, window_bounds = array<i64: 1, 128>}, {pipeline_mode = #tpu.pipeline_mode<synchronous>, transform_indices = @transform_5, window_bounds = array<i64: 128, 128>}, {pipeline_mode = #tpu.pipeline_mode<synchronous>, transform_indices = @transform_6, window_bounds = array<i64: 1, 128>}, {transform_indices = @transform_7, window_bounds = array<i64: 64, 128>}]} {
    %c0 = arith.constant 0 : index
    %c0_0 = arith.constant 0 : index
    %0 = vector.load %arg1[%c0, %c0_0] : memref<64x128xbf16, #tpu.memory_space<vmem>>, vector<64x128xbf16>
    %c0_1 = arith.constant 0 : index
    %c0_2 = arith.constant 0 : index
    %1 = vector.load %arg2[%c0_1, %c0_2] : memref<128x128xbf16, #tpu.memory_space<vmem>>, vector<128x128xbf16>
    %cst = arith.constant dense<0.000000e+00> : vector<64x128xf32>
    %2 = tpu.matmul %0, %1, %cst {dimension_numbers = #tpu.dot_dimension_numbers<[1], [0], [0], [1], [0, 0, 1, 1], [], []>} : vector<64x128xbf16>, vector<128x128xbf16>, vector<64x128xf32> -> vector<64x128xf32>
    %c0_3 = arith.constant 0 : index
    %c0_4 = arith.constant 0 : index
    %3 = vector.load %arg3[%c0_3, %c0_4] : memref<1x128xf32, #tpu.memory_space<vmem>>, vector<1x128xf32>
    %4 = vector.broadcast %3 : vector<1x128xf32> to vector<64x128xf32>
    %5 = arith.addf %2, %4 : vector<64x128xf32>
    %cst_5 = arith.constant 1.000000e-01 : f32
    %6 = vector.broadcast %cst_5 : f32 to vector<64x128xf32>
    %7 = arith.mulf %6, %5 : vector<64x128xf32>
    %8 = arith.maximumf %5, %7 : vector<64x128xf32>
    %9 = arith.truncf %8 : vector<64x128xf32> to vector<64x128xbf16>
    %c0_6 = arith.constant 0 : index
    %c0_7 = arith.constant 0 : index
    %10 = vector.load %arg4[%c0_6, %c0_7] : memref<128x128xbf16, #tpu.memory_space<vmem>>, vector<128x128xbf16>
    %cst_8 = arith.constant dense<0.000000e+00> : vector<64x128xf32>
    %11 = tpu.matmul %9, %10, %cst_8 {dimension_numbers = #tpu.dot_dimension_numbers<[1], [0], [0], [1], [0, 0, 1, 1], [], []>} : vector<64x128xbf16>, vector<128x128xbf16>, vector<64x128xf32> -> vector<64x128xf32>
    %c0_9 = arith.constant 0 : index
    %c0_10 = arith.constant 0 : index
    %12 = vector.load %arg5[%c0_9, %c0_10] : memref<1x128xf32, #tpu.memory_space<vmem>>, vector<1x128xf32>
    %13 = vector.broadcast %12 : vector<1x128xf32> to vector<64x128xf32>
    %14 = arith.addf %11, %13 : vector<64x128xf32>
    %cst_11 = arith.constant 1.000000e-01 : f32
    %15 = vector.broadcast %cst_11 : f32 to vector<64x128xf32>
    %16 = arith.mulf %15, %14 : vector<64x128xf32>
    %17 = arith.maximumf %14, %16 : vector<64x128xf32>
    %18 = arith.truncf %17 : vector<64x128xf32> to vector<64x128xbf16>
    %c0_12 = arith.constant 0 : index
    %c0_13 = arith.constant 0 : index
    %19 = vector.load %arg6[%c0_12, %c0_13] : memref<128x128xbf16, #tpu.memory_space<vmem>>, vector<128x128xbf16>
    %cst_14 = arith.constant dense<0.000000e+00> : vector<64x128xf32>
    %20 = tpu.matmul %18, %19, %cst_14 {dimension_numbers = #tpu.dot_dimension_numbers<[1], [0], [0], [1], [0, 0, 1, 1], [], []>} : vector<64x128xbf16>, vector<128x128xbf16>, vector<64x128xf32> -> vector<64x128xf32>
    %c0_15 = arith.constant 0 : index
    %c0_16 = arith.constant 0 : index
    %21 = vector.load %arg7[%c0_15, %c0_16] : memref<1x128xf32, #tpu.memory_space<vmem>>, vector<1x128xf32>
    %22 = vector.broadcast %21 : vector<1x128xf32> to vector<64x128xf32>
    %23 = arith.addf %20, %22 : vector<64x128xf32>
    %cst_17 = arith.constant 1.000000e-01 : f32
    %24 = vector.broadcast %cst_17 : f32 to vector<64x128xf32>
    %25 = arith.mulf %24, %23 : vector<64x128xf32>
    %26 = arith.maximumf %23, %25 : vector<64x128xf32>
    %27 = arith.truncf %26 : vector<64x128xf32> to vector<64x128xbf16>
    %c0_18 = arith.constant 0 : index
    %c0_19 = arith.constant 0 : index
    %28 = vector.load %arg8[%c0_18, %c0_19] : memref<64x128xbf16, #tpu.memory_space<vmem>>, vector<64x128xbf16>
    tpu.vector_store %arg8[%c0_18, %c0_19], %27 {strides = array<i32>} : memref<64x128xbf16, #tpu.memory_space<vmem>>, vector<64x128xbf16>,
    return
  }
  func.func @transform_0(%arg0: i32) -> (i32, i32) {
    %c0_i32 = arith.constant 0 : i32
    %c0_i32_0 = arith.constant 0 : i32
    return %arg0, %c0_i32 : i32, i32
  }
  func.func @transform_1(%arg0: i32) -> (i32, i32) {
    %c0_i32 = arith.constant 0 : i32
    %c0_i32_0 = arith.constant 0 : i32
    %c0_i32_1 = arith.constant 0 : i32
    return %c0_i32, %c0_i32_0 : i32, i32
  }
  func.func @transform_2(%arg0: i32) -> (i32, i32) {
    %c0_i32 = arith.constant 0 : i32
    %c0_i32_0 = arith.constant 0 : i32
    %c0_i32_1 = arith.constant 0 : i32
    return %c0_i32, %c0_i32_0 : i32, i32
  }
  func.func @transform_3(%arg0: i32) -> (i32, i32) {
    %c0_i32 = arith.constant 0 : i32
    %c0_i32_0 = arith.constant 0 : i32
    %c0_i32_1 = arith.constant 0 : i32
    return %c0_i32, %c0_i32_0 : i32, i32
  }
  func.func @transform_4(%arg0: i32) -> (i32, i32) {
    %c0_i32 = arith.constant 0 : i32
    %c0_i32_0 = arith.constant 0 : i32
    %c0_i32_1 = arith.constant 0 : i32
    return %c0_i32, %c0_i32_0 : i32, i32
  }
  func.func @transform_5(%arg0: i32) -> (i32, i32) {
    %c0_i32 = arith.constant 0 : i32
    %c0_i32_0 = arith.constant 0 : i32
    %c0_i32_1 = arith.constant 0 : i32
    return %c0_i32, %c0_i32_0 : i32, i32
  }
  func.func @transform_6(%arg0: i32) -> (i32, i32) {
    %c0_i32 = arith.constant 0 : i32
    %c0_i32_0 = arith.constant 0 : i32
    %c0_i32_1 = arith.constant 0 : i32
    return %c0_i32, %c0_i32_0 : i32, i32
  }
  func.func @transform_7(%arg0: i32) -> (i32, i32) {
    %c0_i32 = arith.constant 0 : i32
    %c0_i32_0 = arith.constant 0 : i32
    return %arg0, %c0_i32 : i32, i32
  }
}

module attributes {stable_mosaic.version = 11 : i64} {
  func.func @decoder_mlp_kernel(%arg0: i32, %arg1: memref<64x128xbf16, #tpu.memory_space<vmem>>, %arg2: memref<128x128xbf16, #tpu.memory_space<vmem>>, %arg3: memref<1x128xf32, #tpu.memory_space<vmem>>, %arg4: memref<128x128xbf16, #tpu.memory_space<vmem>>, %arg5: memref<1x128xf32, #tpu.memory_space<vmem>>, %arg6: memref<128x128xbf16, #tpu.memory_space<vmem>>, %arg7: memref<1x128xf32, #tpu.memory_space<vmem>>, %arg8: memref<64x128xbf16, #tpu.memory_space<vmem>>) attributes {dimension_semantics = [#tpu.dimension_semantics<parallel>], iteration_bounds = array<i64: 1>, scalar_prefetch = 0 : i64, scratch_operands = 0 : i64, tpu.core_type = #tpu.core_type<tc>, window_params = [{transform_indices = @transform_0, window_bounds = array<i64: 64, 128>}, {pipeline_mode = #tpu.pipeline_mode<synchronous>, transform_indices = @transform_1, window_bounds = array<i64: 128, 128>}, {pipeline_mode = #tpu.pipeline_mode<synchronous>, transform_indices = @transform_2, window_bounds = array<i64: 1, 128>}, {pipeline_mode = #tpu.pipeline_mode<synchronous>, transform_indices = @transform_3, window_bounds = array<i64: 128, 128>}, {pipeline_mode = #tpu.pipeline_mode<synchronous>, transform_indices = @transform_4, window_bounds = array<i64: 1, 128>}, {pipeline_mode = #tpu.pipeline_mode<synchronous>, transform_indices = @transform_5, window_bounds = array<i64: 128, 128>}, {pipeline_mode = #tpu.pipeline_mode<synchronous>, transform_indices = @transform_6, window_bounds = array<i64: 1, 128>}, {transform_indices = @transform_7, window_bounds = array<i64: 64, 128>}]} {
    %c0 = arith.constant 0 : index
    %c0_0 = arith.constant 0 : index
    %0 = vector.load %arg1[%c0, %c0_0] : memref<64x128xbf16, #tpu.memory_space<vmem>>, vector<64x128xbf16>
    %c0_1 = arith.constant 0 : index
    %c0_2 = arith.constant 0 : index
    %1 = vector.load %arg2[%c0_1, %c0_2] : memref<128x128xbf16, #tpu.memory_space<vmem>>, vector<128x128xbf16>
    %cst = arith.constant dense<0.000000e+00> : vector<64x128xf32>
    %2 = tpu.matmul %0, %1, %cst {dimension_numbers = #tpu.dot_dimension_numbers<[1], [0], [0], [1], [0, 0, 1, 1], [], []>} : vector<64x128xbf16>, vector<128x128xbf16>, vector<64x128xf32> -> vector<64x128xf32>
    %c0_3 = arith.constant 0 : index
    %c0_4 = arith.constant 0 : index
    %3 = vector.load %arg3[%c0_3, %c0_4] : memref<1x128xf32, #tpu.memory_space<vmem>>, vector<1x128xf32>
    %4 = vector.broadcast %3 : vector<1x128xf32> to vector<64x128xf32>
    %5 = arith.addf %2, %4 : vector<64x128xf32>
    %cst_5 = arith.constant 1.000000e-01 : f32
    %6 = vector.broadcast %cst_5 : f32 to vector<64x128xf32>
    %7 = arith.mulf %6, %5 : vector<64x128xf32>
    %8 = arith.maximumf %5, %7 : vector<64x128xf32>
    %9 = arith.truncf %8 : vector<64x128xf32> to vector<64x128xbf16>
    %c0_6 = arith.constant 0 : index
    %c0_7 = arith.constant 0 : index
    %10 = vector.load %arg4[%c0_6, %c0_7] : memref<128x128xbf16, #tpu.memory_space<vmem>>, vector<128x128xbf16>
    %cst_8 = arith.constant dense<0.000000e+00> : vector<64x128xf32>
    %11 = tpu.matmul %9, %10, %cst_8 {dimension_numbers = #tpu.dot_dimension_numbers<[1], [0], [0], [1], [0, 0, 1, 1], [], []>} : vector<64x128xbf16>, vector<128x128xbf16>, vector<64x128xf32> -> vector<64x128xf32>
    %c0_9 = arith.constant 0 : index
    %c0_10 = arith.constant 0 : index
    %12 = vector.load %arg5[%c0_9, %c0_10] : memref<1x128xf32, #tpu.memory_space<vmem>>, vector<1x128xf32>
    %13 = vector.broadcast %12 : vector<1x128xf32> to vector<64x128xf32>
    %14 = arith.addf %11, %13 : vector<64x128xf32>
    %cst_11 = arith.constant 1.000000e-01 : f32
    %15 = vector.broadcast %cst_11 : f32 to vector<64x128xf32>
    %16 = arith.mulf %15, %14 : vector<64x128xf32>
    %17 = arith.maximumf %14, %16 : vector<64x128xf32>
    %18 = arith.truncf %17 : vector<64x128xf32> to vector<64x128xbf16>
    %c0_12 = arith.constant 0 : index
    %c0_13 = arith.constant 0 : index
    %19 = vector.load %arg6[%c0_12, %c0_13] : memref<128x128xbf16, #tpu.memory_space<vmem>>, vector<128x128xbf16>
    %cst_14 = arith.constant dense<0.000000e+00> : vector<64x128xf32>
    %20 = tpu.matmul %18, %19, %cst_14 {dimension_numbers = #tpu.dot_dimension_numbers<[1], [0], [0], [1], [0, 0, 1, 1], [], []>} : vector<64x128xbf16>, vector<128x128xbf16>, vector<64x128xf32> -> vector<64x128xf32>
    %c0_15 = arith.constant 0 : index
    %c0_16 = arith.constant 0 : index
    %21 = vector.load %arg7[%c0_15, %c0_16] : memref<1x128xf32, #tpu.memory_space<vmem>>, vector<1x128xf32>
    %22 = vector.broadcast %21 : vector<1x128xf32> to vector<64x128xf32>
    %23 = arith.addf %20, %22 : vector<64x128xf32>
    %cst_17 = arith.constant 1.000000e-01 : f32
    %24 = vector.broadcast %cst_17 : f32 to vector<64x128xf32>
    %25 = arith.mulf %24, %23 : vector<64x128xf32>
    %26 = arith.maximumf %23, %25 : vector<64x128xf32>
    %27 = arith.truncf %26 : vector<64x128xf32> to vector<64x128xbf16>
    %c0_18 = arith.constant 0 : index
    %c0_19 = arith.constant 0 : index
    %28 = vector.load %arg8[%c0_18, %c0_19] : memref<64x128xbf16, #tpu.memory_space<vmem>>, vector<64x128xbf16>
    tpu.vector_store %arg8[%c0_18, %c0_19], %27 {strides = array<i32>} : memref<64x128xbf16, #tpu.memory_space<vmem>>, vector<64x128xbf16>,
    return
  }
  func.func @transform_0(%arg0: i32) -> (i32, i32) {
    %c0_i32 = arith.constant 0 : i32
    %c0_i32_0 = arith.constant 0 : i32
    return %arg0, %c0_i32 : i32, i32
  }
  func.func @transform_1(%arg0: i32) -> (i32, i32) {
    %c0_i32 = arith.constant 0 : i32
    %c0_i32_0 = arith.constant 0 : i32
    %c0_i32_1 = arith.constant 0 : i32
    return %c0_i32, %c0_i32_0 : i32, i32
  }
  func.func @transform_2(%arg0: i32) -> (i32, i32) {
    %c0_i32 = arith.constant 0 : i32
    %c0_i32_0 = arith.constant 0 : i32
    %c0_i32_1 = arith.constant 0 : i32
    return %c0_i32, %c0_i32_0 : i32, i32
  }
  func.func @transform_3(%arg0: i32) -> (i32, i32) {
    %c0_i32 = arith.constant 0 : i32
    %c0_i32_0 = arith.constant 0 : i32
    %c0_i32_1 = arith.constant 0 : i32
    return %c0_i32, %c0_i32_0 : i32, i32
  }
  func.func @transform_4(%arg0: i32) -> (i32, i32) {
    %c0_i32 = arith.constant 0 : i32
    %c0_i32_0 = arith.constant 0 : i32
    %c0_i32_1 = arith.constant 0 : i32
    return %c0_i32, %c0_i32_0 : i32, i32
  }
  func.func @transform_5(%arg0: i32) -> (i32, i32) {
    %c0_i32 = arith.constant 0 : i32
    %c0_i32_0 = arith.constant 0 : i32
    %c0_i32_1 = arith.constant 0 : i32
    return %c0_i32, %c0_i32_0 : i32, i32
  }
  func.func @transform_6(%arg0: i32) -> (i32, i32) {
    %c0_i32 = arith.constant 0 : i32
    %c0_i32_0 = arith.constant 0 : i32
    %c0_i32_1 = arith.constant 0 : i32
    return %c0_i32, %c0_i32_0 : i32, i32
  }
  func.func @transform_7(%arg0: i32) -> (i32, i32) {
    %c0_i32 = arith.constant 0 : i32
    %c0_i32_0 = arith.constant 0 : i32
    return %arg0, %c0_i32 : i32, i32
  }
}

</mosaic_0001>

<llo_original>
// kernel: tpu_custom_call.1
$region0: #{tpu_custom_call.1}
  #allocation0 [shape = 'u32[]', space=smem, size = 0x4, offset = 0x4, fixed_abs, tag = 'smem constant byte address 0x4 - core index']
  #allocation1 [shape = 'u32[144,128]{1,0:T(1,128)}', space=vmem, size = 0x12000, scoped, tag = 'internal scratch']
  %s0 = inlined_call_operand.hbm [shape: bf16[64,128], index: 0, kind: input, shape index: {}]
  %s1 = inlined_call_operand.hbm [shape: bf16[128,128], index: 1, kind: input, shape index: {}]
  %s2 = inlined_call_operand.vmem [shape: f32[1,128], index: 2, kind: input, shape index: {}]
  %s3 = inlined_call_operand.hbm [shape: bf16[128,128], index: 3, kind: input, shape index: {}]
  %s4 = inlined_call_operand.vmem [shape: f32[1,128], index: 4, kind: input, shape index: {}]
  %s5 = inlined_call_operand.hbm [shape: bf16[128,128], index: 5, kind: input, shape index: {}]
  %s6 = inlined_call_operand.vmem [shape: f32[1,128], index: 6, kind: input, shape index: {}]
  %s7 = inlined_call_operand.hbm [shape: bf16[64,128], index: 7, kind: output, shape index: {}]
  %s8 = sld [smem:[#allocation0]]
  $region54: #{tpu_custom_call.1} parent=0
    _
  %s10 = ssub.s32 1, %s8
  %s11 = scalar_select 0, %s10, %s8
  $region1: #{tpu_custom_call.1} parent=0
    #allocation2 [shape = 'u8[16384]{0}', space=vmem, size = 0x4000, scoped, tag = 'input window, operand 0, single buffered']
    #allocation3 [shape = 's32[1]{0}', space=sflag, size = 0x4, scoped, tag = 'scoped memory for tpu_custom_call.1']
    #allocation4 [shape = 's32[1]{0}', space=sflag, size = 0x4, scoped, tag = 'scoped memory for tpu_custom_call.1']
    #allocation5 [shape = 'u8[32768]{0}', space=vmem, size = 0x8000, scoped, tag = 'input window, operand 1, single buffered']
    #allocation6 [shape = 's32[1]{0}', space=sflag, size = 0x4, scoped, tag = 'scoped memory for tpu_custom_call.1']
    #allocation7 [shape = 'u8[32768]{0}', space=vmem, size = 0x8000, scoped, tag = 'input window, operand 3, single buffered']
    #allocation8 [shape = 'u8[32768]{0}', space=vmem, size = 0x8000, scoped, tag = 'input window, operand 5, single buffered']
    #allocation9 [shape = 's32[1]{0}', space=sflag, size = 0x4, scoped, tag = 'scoped memory for tpu_custom_call.1']
    #allocation10 [shape = 'u8[16384]{0}', space=vmem, size = 0x4000, scoped, tag = 'output window, operand 0, single buffered']
    %12 = vsyncpa [#allocation3], 0
    %13 = vsyncpa [#allocation6], 0
    %14 = vsyncpa [#allocation9], 0
    %15 = vsyncpa [#allocation4], 0
    // Predicated region
    $region2: #{tpu_custom_call.1} parent=1 // pred_check
      _
    $region3: #{tpu_custom_call.1} parent=1 // pred_check_branch
      %17 = sbr.rel (0) target = $region5
    $region4: #{tpu_custom_call.1} parent=1 // pred_region
      %s19 = ssub.s32 512, 512
      %20 = vsyncadd [#allocation3], %s19
      %s21 = sshll.u32 [#allocation2], 4
      %s22 = int_to_ptr.vmem [resolvable:$true] %s21
      %27 = dma.hbm_to_vmem [thread:$0]  %s0, 512, %s22, [#allocation3], 64, 64, 4
    $region5: #{tpu_custom_call.1} parent=1 // pred_fallthru
      _
    // Predicated region
    $region6: #{tpu_custom_call.1} parent=1 // pred_check
      _
    $region7: #{tpu_custom_call.1} parent=1 // pred_check_branch
      %29 = sbr.rel (0) target = $region9
    $region8: #{tpu_custom_call.1} parent=1 // pred_region
      %s31 = ssub.s32 1024, 1024
      %32 = vsyncadd [#allocation6], %s31
      %s33 = sshll.u32 [#allocation5], 4
      %s34 = int_to_ptr.vmem [resolvable:$true] %s33
      %39 = dma.hbm_to_vmem [thread:$0]  %s1, 1024, %s34, [#allocation6], 64, 64, 4
    $region9: #{tpu_custom_call.1} parent=1 // pred_fallthru
      _
    // Predicated region
    $region10: #{tpu_custom_call.1} parent=1 // pred_check
      _
    $region11: #{tpu_custom_call.1} parent=1 // pred_check_branch
      %41 = sbr.rel (0) target = $region13
    $region12: #{tpu_custom_call.1} parent=1 // pred_region
      _
    $region13: #{tpu_custom_call.1} parent=1 // pred_fallthru
      _
    // Predicated region
    $region14: #{tpu_custom_call.1} parent=1 // pred_check
      _
    $region15: #{tpu_custom_call.1} parent=1 // pred_check_branch
      %43 = sbr.rel (0) target = $region17
    $region16: #{tpu_custom_call.1} parent=1 // pred_region
      %s45 = ssub.s32 1024, 1024
      %46 = vsyncadd [#allocation6], %s45
      %s47 = sshll.u32 [#allocation7], 4
      %s48 = int_to_ptr.vmem [resolvable:$true] %s47
      %53 = dma.hbm_to_vmem [thread:$0]  %s3, 1024, %s48, [#allocation6], 64, 64, 4
    $region17: #{tpu_custom_call.1} parent=1 // pred_fallthru
      _
    // Predicated region
    $region18: #{tpu_custom_call.1} parent=1 // pred_check
      _
    $region19: #{tpu_custom_call.1} parent=1 // pred_check_branch
      %55 = sbr.rel (0) target = $region21
    $region20: #{tpu_custom_call.1} parent=1 // pred_region
      _
    $region21: #{tpu_custom_call.1} parent=1 // pred_fallthru
      _
    // Predicated region
    $region22: #{tpu_custom_call.1} parent=1 // pred_check
      _
    $region23: #{tpu_custom_call.1} parent=1 // pred_check_branch
      %57 = sbr.rel (0) target = $region25
    $region24: #{tpu_custom_call.1} parent=1 // pred_region
      %s59 = ssub.s32 1024, 1024
      %60 = vsyncadd [#allocation9], %s59
      %s61 = sshll.u32 [#allocation8], 4
      %s62 = int_to_ptr.vmem [resolvable:$true] %s61
      %67 = dma.hbm_to_vmem [thread:$0]  %s5, 1024, %s62, [#allocation9], 64, 64, 4
    $region25: #{tpu_custom_call.1} parent=1 // pred_fallthru
      _
    // Predicated region
    $region26: #{tpu_custom_call.1} parent=1 // pred_check
      _
    $region27: #{tpu_custom_call.1} parent=1 // pred_check_branch
      %69 = sbr.rel (0) target = $region29
    $region28: #{tpu_custom_call.1} parent=1 // pred_region
      _
    $region29: #{tpu_custom_call.1} parent=1 // pred_fallthru
      _
    // Predicated region
    $region30: #{tpu_custom_call.1} parent=1 // pred_check
      _
    $region31: #{tpu_custom_call.1} parent=1 // pred_check_branch
      %71 = sbr.rel (0) target = $region33
    $region32: #{tpu_custom_call.1} parent=1 // pred_region
      %72 = dma.done [#allocation3], 512
    $region33: #{tpu_custom_call.1} parent=1 // pred_fallthru
      _
    // Predicated region
    $region34: #{tpu_custom_call.1} parent=1 // pred_check
      _
    $region35: #{tpu_custom_call.1} parent=1 // pred_check_branch
      %74 = sbr.rel (0) target = $region37
    $region36: #{tpu_custom_call.1} parent=1 // pred_region
      %75 = dma.done [#allocation6], 1024
    $region37: #{tpu_custom_call.1} parent=1 // pred_fallthru
      _
    // Predicated region
    $region38: #{tpu_custom_call.1} parent=1 // pred_check
      _
    $region39: #{tpu_custom_call.1} parent=1 // pred_check_branch
      %77 = sbr.rel (0) target = $region41
    $region40: #{tpu_custom_call.1} parent=1 // pred_region
      %78 = dma.done [#allocation6], 1024
    $region41: #{tpu_custom_call.1} parent=1 // pred_fallthru
      _
    // Predicated region
    $region42: #{tpu_custom_call.1} parent=1 // pred_check
      _
    $region43: #{tpu_custom_call.1} parent=1 // pred_check_branch
      %80 = sbr.rel (0) target = $region45
    $region44: #{tpu_custom_call.1} parent=1 // pred_region
      %81 = dma.done [#allocation9], 1024
    $region45: #{tpu_custom_call.1} parent=1 // pred_fallthru
      _
    %v83 = vld [vmem:[#allocation2] sm:$0xf]
    %v84 = vld [vmem:[#allocation2 + $0x4] sm:$0xf]
    %v85 = vld [vmem:[#allocation2 + $0x8] sm:$0xf]
    %v86 = vld [vmem:[#allocation2 + $0xc] sm:$0xf]
    %v87 = vld [vmem:[#allocation2 + $0x10] sm:$0xf]
    %v88 = vld [vmem:[#allocation2 + $0x14] sm:$0xf]
    %v89 = vld [vmem:[#allocation2 + $0x18] sm:$0xf]
    %v90 = vld [vmem:[#allocation2 + $0x1c] sm:$0xf]
    %v91 = vld [vmem:[#allocation5] sm:$0xf]
    %v92 = vld [vmem:[#allocation5 + $0x4] sm:$0xf]
    %v93 = vld [vmem:[#allocation5 + $0x8] sm:$0xf]
    %v94 = vld [vmem:[#allocation5 + $0xc] sm:$0xf]
    %v95 = vld [vmem:[#allocation5 + $0x10] sm:$0xf]
    %v96 = vld [vmem:[#allocation5 + $0x14] sm:$0xf]
    %v97 = vld [vmem:[#allocation5 + $0x18] sm:$0xf]
    %v98 = vld [vmem:[#allocation5 + $0x1c] sm:$0xf]
    %v99 = vld [vmem:[#allocation5 + $0x20] sm:$0xf]
    %v100 = vld [vmem:[#allocation5 + $0x24] sm:$0xf]
    %v101 = vld [vmem:[#allocation5 + $0x28] sm:$0xf]
    %v102 = vld [vmem:[#allocation5 + $0x2c] sm:$0xf]
    %v103 = vld [vmem:[#allocation5 + $0x30] sm:$0xf]
    %v104 = vld [vmem:[#allocation5 + $0x34] sm:$0xf]
    %v105 = vld [vmem:[#allocation5 + $0x38] sm:$0xf]
    %v106 = vld [vmem:[#allocation5 + $0x3c] sm:$0xf]
    %v107 = vld [vmem:[%s2] sm:$0x1]
    %v109 = vlaneseq
    %v110 = vshrl.u32 %v109, 7
    %v111 = vsub.s32 0, %v110
    %v112 = vrot.slane %v107, %v111
    %v122 = vunpack.c.l.b16 %v83
    %v123 = vunpack.c.l.b16 %v84
    %v124 = vunpack.c.l.b16 %v85
    %v125 = vunpack.c.l.b16 %v86
    %v126 = vunpack.c.l.b16 %v87
    %v127 = vunpack.c.l.b16 %v88
    %v128 = vunpack.c.l.b16 %v89
    %v129 = vunpack.c.l.b16 %v90
    %v130 = vpack.c.b16 %v123, %v122
    %v131 = vpack.c.b16 %v125, %v124
    %v132 = vpack.c.b16 %v127, %v126
    %v133 = vpack.c.b16 %v129, %v128
    %v154 = vunpack.c.l.b16 %v91
    %v155 = vunpack.c.l.b16 %v92
    %v156 = vunpack.c.l.b16 %v93
    %v157 = vunpack.c.l.b16 %v94
    %v158 = vunpack.c.l.b16 %v95
    %v159 = vunpack.c.l.b16 %v96
    %v160 = vunpack.c.l.b16 %v97
    %v161 = vunpack.c.l.b16 %v98
    %v162 = vunpack.c.l.b16 %v99
    %v163 = vunpack.c.l.b16 %v100
    %v164 = vunpack.c.l.b16 %v101
    %v165 = vunpack.c.l.b16 %v102
    %v166 = vunpack.c.l.b16 %v103
    %v167 = vunpack.c.l.b16 %v104
    %v168 = vunpack.c.l.b16 %v105
    %v169 = vunpack.c.l.b16 %v106
    %v170 = vpack.c.b16 %v155, %v154
    %v171 = vpack.c.b16 %v157, %v156
    %v172 = vpack.c.b16 %v159, %v158
    %v173 = vpack.c.b16 %v161, %v160
    %v174 = vpack.c.b16 %v163, %v162
    %v175 = vpack.c.b16 %v165, %v164
    %v176 = vpack.c.b16 %v167, %v166
    %v177 = vpack.c.b16 %v169, %v168
    %186 = vmatprep.subr.bf16.mxu0 0
    %187 = vmatpush1.bf16.msra.mxu0 %v177
    %188 = vmatprep.subr.bf16.mxu0 0
    %189 = vmatpush1.bf16.msra.mxu0 %v176
    %190 = vmatprep.subr.bf16.mxu0 0
    %191 = vmatpush1.bf16.msra.mxu0 %v175
    %192 = vmatprep.subr.bf16.mxu0 0
    %193 = vmatpush1.bf16.msra.mxu0 %v174
    %194 = vmatprep.subr.bf16.mxu0 0
    %195 = vmatpush1.bf16.msra.mxu0 %v173
    %196 = vmatprep.subr.bf16.mxu0 0
    %197 = vmatpush1.bf16.msra.mxu0 %v172
    %198 = vmatprep.subr.bf16.mxu0 0
    %199 = vmatpush1.bf16.msra.mxu0 %v171
    %200 = vmatprep.subr.bf16.mxu0 0
    %201 = vmatpush1.bf16.msra.mxu0 %v170
    %202 = vmatprep.subr.bf16.mxu0 0
    %203 = vmatpush2.bf16.msra.mxu0 0
    %204 = vmatprep.subr.bf16.mxu0 0
    %205 = vmatpush2.bf16.msra.mxu0 0
    %206 = vmatprep.subr.bf16.mxu0 0
    %207 = vmatpush2.bf16.msra.mxu0 0
    %208 = vmatprep.subr.bf16.mxu0 0
    %209 = vmatpush2.bf16.msra.mxu0 0
    %210 = vmatprep.subr.bf16.mxu0 0
    %211 = vmatpush2.bf16.msra.mxu0 0
    %212 = vmatprep.subr.bf16.mxu0 0
    %213 = vmatpush2.bf16.msra.mxu0 0
    %214 = vmatprep.subr.bf16.mxu0 0
    %215 = vmatpush2.bf16.msra.mxu0 0
    %216 = vmatprep.subr.bf16.mxu0 0
    %217 = vmatpush2.bf16.msra.mxu0 0
    %218 = vmatprep.mubr.bf16.mxu0 0
    %219 = vmatmul.mubr.bf16.gmra.mxu0 %v130
    %v220 = vpop.f32.mrf.mxu0
    %v221 = vadd.f32 %v112, %v220
    %v222 = vpop.f32.mrf.mxu0
    %v223 = vpop.f32.mrf.mxu0
    %v224 = vadd.f32 %v112, %v223
    %v225 = vpop.f32.mrf.mxu0
    %226 = vmatprep.mubr.bf16.mxu0 0
    %227 = vmatmul.mubr.bf16.gmra.mxu0 %v131
    %v228 = vpop.f32.mrf.mxu0
    %v229 = vadd.f32 %v112, %v228
    %v230 = vpop.f32.mrf.mxu0
    %v231 = vpop.f32.mrf.mxu0
    %v232 = vadd.f32 %v112, %v231
    %v233 = vpop.f32.mrf.mxu0
    %234 = vmatprep.mubr.bf16.mxu0 0
    %235 = vmatmul.mubr.bf16.gmra.mxu0 %v132
    %v236 = vpop.f32.mrf.mxu0
    %v237 = vadd.f32 %v112, %v236
    %v238 = vpop.f32.mrf.mxu0
    %v239 = vpop.f32.mrf.mxu0
    %v240 = vadd.f32 %v112, %v239
    %v241 = vpop.f32.mrf.mxu0
    %242 = vmatprep.mubr.bf16.mxu0 0
    %243 = vmatmul.mubr.bf16.gmra.mxu0 %v133
    %v244 = vpop.f32.mrf.mxu0
    %v245 = vadd.f32 %v112, %v244
    %v246 = vpop.f32.mrf.mxu0
    %v247 = vpop.f32.mrf.mxu0
    %v248 = vadd.f32 %v112, %v247
    %v249 = vpop.f32.mrf.mxu0
    %250 = vdwg.mxu0
    %v251 = vmul.f32 %v221, 0.1
    %v252 = vmul.f32 %v224, 0.1
    %v253 = vmul.f32 %v229, 0.1
    %v254 = vmul.f32 %v232, 0.1
    %v255 = vmul.f32 %v237, 0.1
    %v256 = vmul.f32 %v240, 0.1
    %v257 = vmul.f32 %v245, 0.1
    %v258 = vmul.f32 %v248, 0.1
    %v259 = vmax.f32 %v221, %v251
    %v260 = vmax.f32 %v224, %v252
    %v261 = vmax.f32 %v229, %v253
    %v262 = vmax.f32 %v232, %v254
    %v263 = vmax.f32 %v237, %v255
    %v264 = vmax.f32 %v240, %v256
    %v265 = vmax.f32 %v245, %v257
    %v266 = vmax.f32 %v248, %v258
    %v267 = vpack.c.bf16 %v260, %v259
    %v268 = vpack.c.bf16 %v262, %v261
    %v269 = vpack.c.bf16 %v264, %v263
    %v270 = vpack.c.bf16 %v266, %v265
    %v271 = vld [vmem:[#allocation7] sm:$0xf]
    %v272 = vld [vmem:[#allocation7 + $0x4] sm:$0xf]
    %v273 = vld [vmem:[#allocation7 + $0x8] sm:$0xf]
    %v274 = vld [vmem:[#allocation7 + $0xc] sm:$0xf]
    %v275 = vld [vmem:[#allocation7 + $0x10] sm:$0xf]
    %v276 = vld [vmem:[#allocation7 + $0x14] sm:$0xf]
    %v277 = vld [vmem:[#allocation7 + $0x18] sm:$0xf]
    %v278 = vld [vmem:[#allocation7 + $0x1c] sm:$0xf]
    %v279 = vld [vmem:[#allocation7 + $0x20] sm:$0xf]
    %v280 = vld [vmem:[#allocation7 + $0x24] sm:$0xf]
    %v281 = vld [vmem:[#allocation7 + $0x28] sm:$0xf]
    %v282 = vld [vmem:[#allocation7 + $0x2c] sm:$0xf]
    %v283 = vld [vmem:[#allocation7 + $0x30] sm:$0xf]
    %v284 = vld [vmem:[#allocation7 + $0x34] sm:$0xf]
    %v285 = vld [vmem:[#allocation7 + $0x38] sm:$0xf]
    %v286 = vld [vmem:[#allocation7 + $0x3c] sm:$0xf]
    %v287 = vld [vmem:[%s4] sm:$0x1]
    %v289 = vlaneseq
    %v290 = vshrl.u32 %v289, 7
    %v291 = vsub.s32 0, %v290
    %v292 = vrot.slane %v287, %v291
    %v310 = vunpack.c.l.b16 %v271
    %v311 = vunpack.c.l.b16 %v272
    %v312 = vunpack.c.l.b16 %v273
    %v313 = vunpack.c.l.b16 %v274
    %v314 = vunpack.c.l.b16 %v275
    %v315 = vunpack.c.l.b16 %v276
    %v316 = vunpack.c.l.b16 %v277
    %v317 = vunpack.c.l.b16 %v278
    %v318 = vunpack.c.l.b16 %v279
    %v319 = vunpack.c.l.b16 %v280
    %v320 = vunpack.c.l.b16 %v281
    %v321 = vunpack.c.l.b16 %v282
    %v322 = vunpack.c.l.b16 %v283
    %v323 = vunpack.c.l.b16 %v284
    %v324 = vunpack.c.l.b16 %v285
    %v325 = vunpack.c.l.b16 %v286
    %v326 = vpack.c.b16 %v311, %v310
    %v327 = vpack.c.b16 %v313, %v312
    %v328 = vpack.c.b16 %v315, %v314
    %v329 = vpack.c.b16 %v317, %v316
    %v330 = vpack.c.b16 %v319, %v318
    %v331 = vpack.c.b16 %v321, %v320
    %v332 = vpack.c.b16 %v323, %v322
    %v333 = vpack.c.b16 %v325, %v324
    %342 = vmatprep.subr.bf16.mxu0 0
    %343 = vmatpush1.bf16.msra.mxu0 %v333
    %344 = vmatprep.subr.bf16.mxu0 0
    %345 = vmatpush1.bf16.msra.mxu0 %v332
    %346 = vmatprep.subr.bf16.mxu0 0
    %347 = vmatpush1.bf16.msra.mxu0 %v331
    %348 = vmatprep.subr.bf16.mxu0 0
    %349 = vmatpush1.bf16.msra.mxu0 %v330
    %350 = vmatprep.subr.bf16.mxu0 0
    %351 = vmatpush1.bf16.msra.mxu0 %v329
    %352 = vmatprep.subr.bf16.mxu0 0
    %353 = vmatpush1.bf16.msra.mxu0 %v328
    %354 = vmatprep.subr.bf16.mxu0 0
    %355 = vmatpush1.bf16.msra.mxu0 %v327
    %356 = vmatprep.subr.bf16.mxu0 0
    %357 = vmatpush1.bf16.msra.mxu0 %v326
    %358 = vmatprep.subr.bf16.mxu0 0
    %359 = vmatpush2.bf16.msra.mxu0 0
    %360 = vmatprep.subr.bf16.mxu0 0
    %361 = vmatpush2.bf16.msra.mxu0 0
    %362 = vmatprep.subr.bf16.mxu0 0
    %363 = vmatpush2.bf16.msra.mxu0 0
    %364 = vmatprep.subr.bf16.mxu0 0
    %365 = vmatpush2.bf16.msra.mxu0 0
    %366 = vmatprep.subr.bf16.mxu0 0
    %367 = vmatpush2.bf16.msra.mxu0 0
    %368 = vmatprep.subr.bf16.mxu0 0
    %369 = vmatpush2.bf16.msra.mxu0 0
    %370 = vmatprep.subr.bf16.mxu0 0
    %371 = vmatpush2.bf16.msra.mxu0 0
    %372 = vmatprep.subr.bf16.mxu0 0
    %373 = vmatpush2.bf16.msra.mxu0 0
    %374 = vmatprep.mubr.bf16.mxu0 0
    %375 = vmatmul.mubr.bf16.gmra.mxu0 %v267
    %v376 = vpop.f32.mrf.mxu0
    %v377 = vadd.f32 %v292, %v376
    %v378 = vpop.f32.mrf.mxu0
    %v379 = vpop.f32.mrf.mxu0
    %v380 = vadd.f32 %v292, %v379
    %v381 = vpop.f32.mrf.mxu0
    %382 = vmatprep.mubr.bf16.mxu0 0
    %383 = vmatmul.mubr.bf16.gmra.mxu0 %v268
    %v384 = vpop.f32.mrf.mxu0
    %v385 = vadd.f32 %v292, %v384
    %v386 = vpop.f32.mrf.mxu0
    %v387 = vpop.f32.mrf.mxu0
    %v388 = vadd.f32 %v292, %v387
    %v389 = vpop.f32.mrf.mxu0
    %390 = vmatprep.mubr.bf16.mxu0 0
    %391 = vmatmul.mubr.bf16.gmra.mxu0 %v269
    %v392 = vpop.f32.mrf.mxu0
    %v393 = vadd.f32 %v292, %v392
    %v394 = vpop.f32.mrf.mxu0
    %v395 = vpop.f32.mrf.mxu0
    %v396 = vadd.f32 %v292, %v395
    %v397 = vpop.f32.mrf.mxu0
    %398 = vmatprep.mubr.bf16.mxu0 0
    %399 = vmatmul.mubr.bf16.gmra.mxu0 %v270
    %v400 = vpop.f32.mrf.mxu0
    %v401 = vadd.f32 %v292, %v400
    %v402 = vpop.f32.mrf.mxu0
    %v403 = vpop.f32.mrf.mxu0
    %v404 = vadd.f32 %v292, %v403
    %v405 = vpop.f32.mrf.mxu0
    %406 = vdwg.mxu0
    %v407 = vmul.f32 %v377, 0.1
    %v408 = vmul.f32 %v380, 0.1
    %v409 = vmul.f32 %v385, 0.1
    %v410 = vmul.f32 %v388, 0.1
    %v411 = vmul.f32 %v393, 0.1
    %v412 = vmul.f32 %v396, 0.1
    %v413 = vmul.f32 %v401, 0.1
    %v414 = vmul.f32 %v404, 0.1
    %v415 = vmax.f32 %v377, %v407
    %v416 = vmax.f32 %v380, %v408
    %v417 = vmax.f32 %v385, %v409
    %v418 = vmax.f32 %v388, %v410
    %v419 = vmax.f32 %v393, %v411
    %v420 = vmax.f32 %v396, %v412
    %v421 = vmax.f32 %v401, %v413
    %v422 = vmax.f32 %v404, %v414
    %v423 = vpack.c.bf16 %v416, %v415
    %v424 = vpack.c.bf16 %v418, %v417
    %v425 = vpack.c.bf16 %v420, %v419
    %v426 = vpack.c.bf16 %v422, %v421
    %v427 = vld [vmem:[#allocation8] sm:$0xf]
    %v428 = vld [vmem:[#allocation8 + $0x4] sm:$0xf]
    %v429 = vld [vmem:[#allocation8 + $0x8] sm:$0xf]
    %v430 = vld [vmem:[#allocation8 + $0xc] sm:$0xf]
    %v431 = vld [vmem:[#allocation8 + $0x10] sm:$0xf]
    %v432 = vld [vmem:[#allocation8 + $0x14] sm:$0xf]
    %v433 = vld [vmem:[#allocation8 + $0x18] sm:$0xf]
    %v434 = vld [vmem:[#allocation8 + $0x1c] sm:$0xf]
    %v435 = vld [vmem:[#allocation8 + $0x20] sm:$0xf]
    %v436 = vld [vmem:[#allocation8 + $0x24] sm:$0xf]
    %v437 = vld [vmem:[#allocation8 + $0x28] sm:$0xf]
    %v438 = vld [vmem:[#allocation8 + $0x2c] sm:$0xf]
    %v439 = vld [vmem:[#allocation8 + $0x30] sm:$0xf]
    %v440 = vld [vmem:[#allocation8 + $0x34] sm:$0xf]
    %v441 = vld [vmem:[#allocation8 + $0x38] sm:$0xf]
    %v442 = vld [vmem:[#allocation8 + $0x3c] sm:$0xf]
    %v443 = vld [vmem:[%s6] sm:$0x1]
    %v445 = vlaneseq
    %v446 = vshrl.u32 %v445, 7
    %v447 = vsub.s32 0, %v446
    %v448 = vrot.slane %v443, %v447
    %v466 = vunpack.c.l.b16 %v427
    %v467 = vunpack.c.l.b16 %v428
    %v468 = vunpack.c.l.b16 %v429
    %v469 = vunpack.c.l.b16 %v430
    %v470 = vunpack.c.l.b16 %v431
    %v471 = vunpack.c.l.b16 %v432
    %v472 = vunpack.c.l.b16 %v433
    %v473 = vunpack.c.l.b16 %v434
    %v474 = vunpack.c.l.b16 %v435
    %v475 = vunpack.c.l.b16 %v436
    %v476 = vunpack.c.l.b16 %v437
    %v477 = vunpack.c.l.b16 %v438
    %v478 = vunpack.c.l.b16 %v439
    %v479 = vunpack.c.l.b16 %v440
    %v480 = vunpack.c.l.b16 %v441
    %v481 = vunpack.c.l.b16 %v442
    %v482 = vpack.c.b16 %v467, %v466
    %v483 = vpack.c.b16 %v469, %v468
    %v484 = vpack.c.b16 %v471, %v470
    %v485 = vpack.c.b16 %v473, %v472
    %v486 = vpack.c.b16 %v475, %v474
    %v487 = vpack.c.b16 %v477, %v476
    %v488 = vpack.c.b16 %v479, %v478
    %v489 = vpack.c.b16 %v481, %v480
    %498 = vmatprep.subr.bf16.mxu0 0
    %499 = vmatpush1.bf16.msra.mxu0 %v489
    %500 = vmatprep.subr.bf16.mxu0 0
    %501 = vmatpush1.bf16.msra.mxu0 %v488
    %502 = vmatprep.subr.bf16.mxu0 0
    %503 = vmatpush1.bf16.msra.mxu0 %v487
    %504 = vmatprep.subr.bf16.mxu0 0
    %505 = vmatpush1.bf16.msra.mxu0 %v486
    %506 = vmatprep.subr.bf16.mxu0 0
    %507 = vmatpush1.bf16.msra.mxu0 %v485
    %508 = vmatprep.subr.bf16.mxu0 0
    %509 = vmatpush1.bf16.msra.mxu0 %v484
    %510 = vmatprep.subr.bf16.mxu0 0
    %511 = vmatpush1.bf16.msra.mxu0 %v483
    %512 = vmatprep.subr.bf16.mxu0 0
    %513 = vmatpush1.bf16.msra.mxu0 %v482
    %514 = vmatprep.subr.bf16.mxu0 0
    %515 = vmatpush2.bf16.msra.mxu0 0
    %516 = vmatprep.subr.bf16.mxu0 0
    %517 = vmatpush2.bf16.msra.mxu0 0
    %518 = vmatprep.subr.bf16.mxu0 0
    %519 = vmatpush2.bf16.msra.mxu0 0
    %520 = vmatprep.subr.bf16.mxu0 0
    %521 = vmatpush2.bf16.msra.mxu0 0
    %522 = vmatprep.subr.bf16.mxu0 0
    %523 = vmatpush2.bf16.msra.mxu0 0
    %524 = vmatprep.subr.bf16.mxu0 0
    %525 = vmatpush2.bf16.msra.mxu0 0
    %526 = vmatprep.subr.bf16.mxu0 0
    %527 = vmatpush2.bf16.msra.mxu0 0
    %528 = vmatprep.subr.bf16.mxu0 0
    %529 = vmatpush2.bf16.msra.mxu0 0
    %530 = vmatprep.mubr.bf16.mxu0 0
    %531 = vmatmul.mubr.bf16.gmra.mxu0 %v423
    %v532 = vpop.f32.mrf.mxu0
    %v533 = vadd.f32 %v448, %v532
    %v534 = vpop.f32.mrf.mxu0
    %v535 = vpop.f32.mrf.mxu0
    %v536 = vadd.f32 %v448, %v535
    %v537 = vpop.f32.mrf.mxu0
    %538 = vmatprep.mubr.bf16.mxu0 0
    %539 = vmatmul.mubr.bf16.gmra.mxu0 %v424
    %v540 = vpop.f32.mrf.mxu0
    %v541 = vadd.f32 %v448, %v540
    %v542 = vpop.f32.mrf.mxu0
    %v543 = vpop.f32.mrf.mxu0
    %v544 = vadd.f32 %v448, %v543
    %v545 = vpop.f32.mrf.mxu0
    %546 = vmatprep.mubr.bf16.mxu0 0
    %547 = vmatmul.mubr.bf16.gmra.mxu0 %v425
    %v548 = vpop.f32.mrf.mxu0
    %v549 = vadd.f32 %v448, %v548
    %v550 = vpop.f32.mrf.mxu0
    %v551 = vpop.f32.mrf.mxu0
    %v552 = vadd.f32 %v448, %v551
    %v553 = vpop.f32.mrf.mxu0
    %554 = vmatprep.mubr.bf16.mxu0 0
    %555 = vmatmul.mubr.bf16.gmra.mxu0 %v426
    %v556 = vpop.f32.mrf.mxu0
    %v557 = vadd.f32 %v448, %v556
    %v558 = vpop.f32.mrf.mxu0
    %v559 = vpop.f32.mrf.mxu0
    %v560 = vadd.f32 %v448, %v559
    %v561 = vpop.f32.mrf.mxu0
    %562 = vdwg.mxu0
    %v563 = vmul.f32 %v533, 0.1
    %v564 = vmul.f32 %v536, 0.1
    %v565 = vmul.f32 %v541, 0.1
    %v566 = vmul.f32 %v544, 0.1
    %v567 = vmul.f32 %v549, 0.1
    %v568 = vmul.f32 %v552, 0.1
    %v569 = vmul.f32 %v557, 0.1
    %v570 = vmul.f32 %v560, 0.1
    %v571 = vmax.f32 %v533, %v563
    %v572 = vmax.f32 %v536, %v564
    %v573 = vmax.f32 %v541, %v565
    %v574 = vmax.f32 %v544, %v566
    %v575 = vmax.f32 %v549, %v567
    %v576 = vmax.f32 %v552, %v568
    %v577 = vmax.f32 %v557, %v569
    %v578 = vmax.f32 %v560, %v570
    %v579 = vpack.c.bf16 %v572, %v571
    %v580 = vpack.c.bf16 %v574, %v573
    %v581 = vpack.c.bf16 %v576, %v575
    %v582 = vpack.c.bf16 %v578, %v577
    %v587 = vunpack.c.l.b16 %v579
    %v588 = vunpack.c.h.b16 %v579
    %v589 = vunpack.c.l.b16 %v580
    %v590 = vunpack.c.h.b16 %v580
    %v591 = vunpack.c.l.b16 %v581
    %v592 = vunpack.c.h.b16 %v581
    %v593 = vunpack.c.l.b16 %v582
    %v594 = vunpack.c.h.b16 %v582
    %v595 = vpack.c.b16 %v587, %v587
    %v596 = vpack.c.b16 %v588, %v588
    %v597 = vpack.c.b16 %v589, %v589
    %v598 = vpack.c.b16 %v590, %v590
    %v599 = vpack.c.b16 %v591, %v591
    %v600 = vpack.c.b16 %v592, %v592
    %v601 = vpack.c.b16 %v593, %v593
    %v602 = vpack.c.b16 %v594, %v594
    %611 = vst [vmem:[#allocation10] sm:$0xf] %v595
    %612 = vst [vmem:[#allocation10 + $0x4] sm:$0xf] %v596
    %613 = vst [vmem:[#allocation10 + $0x8] sm:$0xf] %v597
    %614 = vst [vmem:[#allocation10 + $0xc] sm:$0xf] %v598
    %615 = vst [vmem:[#allocation10 + $0x10] sm:$0xf] %v599
    %616 = vst [vmem:[#allocation10 + $0x14] sm:$0xf] %v600
    %617 = vst [vmem:[#allocation10 + $0x18] sm:$0xf] %v601
    %618 = vst [vmem:[#allocation10 + $0x1c] sm:$0xf] %v602
    // Predicated region
    $region46: #{tpu_custom_call.1} parent=1 // pred_check
      _
    $region47: #{tpu_custom_call.1} parent=1 // pred_check_branch
      %620 = sbr.rel (0) target = $region49
    $region48: #{tpu_custom_call.1} parent=1 // pred_region
      %s622 = ssub.s32 512, 512
      %623 = vsyncadd [#allocation4], %s622
      %s624 = sshll.u32 [#allocation10], 4
      %s625 = int_to_ptr.vmem [resolvable:$true] %s624
      %630 = dma.vmem_to_hbm [thread:$0]  %s625, 512, %s7, [#allocation4], 64, 64, 4
    $region49: #{tpu_custom_call.1} parent=1 // pred_fallthru
      _
    // Predicated region
    $region50: #{tpu_custom_call.1} parent=1 // pred_check
      _
    $region51: #{tpu_custom_call.1} parent=1 // pred_check_branch
      %632 = sbr.rel (0) target = $region53
    $region52: #{tpu_custom_call.1} parent=1 // pred_region
      %633 = dma.done [#allocation4], 512
    $region53: #{tpu_custom_call.1} parent=1 // pred_fallthru
      _
    %634 = vsyncpa [#allocation3], 1
    %635 = vsyncpa [#allocation6], 1
    %636 = vsyncpa [#allocation9], 1
    %637 = vsyncpa [#allocation4], 1

// kernel: tpu_custom_call.1
$region0: #{tpu_custom_call.1}
  #allocation0 [shape = 'u32[]', space=smem, size = 0x4, offset = 0x4, fixed_abs, tag = 'smem constant byte address 0x4 - core index']
  #allocation1 [shape = 'u32[144,128]{1,0:T(1,128)}', space=vmem, size = 0x12000, scoped, tag = 'internal scratch']
  %s0 = inlined_call_operand.hbm [shape: bf16[64,128], index: 0, kind: input, shape index: {}]
  %s1 = inlined_call_operand.hbm [shape: bf16[128,128], index: 1, kind: input, shape index: {}]
  %s2 = inlined_call_operand.vmem [shape: f32[1,128], index: 2, kind: input, shape index: {}]
  %s3 = inlined_call_operand.hbm [shape: bf16[128,128], index: 3, kind: input, shape index: {}]
  %s4 = inlined_call_operand.vmem [shape: f32[1,128], index: 4, kind: input, shape index: {}]
  %s5 = inlined_call_operand.hbm [shape: bf16[128,128], index: 5, kind: input, shape index: {}]
  %s6 = inlined_call_operand.vmem [shape: f32[1,128], index: 6, kind: input, shape index: {}]
  %s7 = inlined_call_operand.hbm [shape: bf16[64,128], index: 7, kind: output, shape index: {}]
  %s8 = sld [smem:[#allocation0]]
  $region54: #{tpu_custom_call.1} parent=0
    _
  %s10 = ssub.s32 1, %s8
  %s11 = scalar_select 0, %s10, %s8
  $region1: #{tpu_custom_call.1} parent=0
    #allocation2 [shape = 'u8[16384]{0}', space=vmem, size = 0x4000, scoped, tag = 'input window, operand 0, single buffered']
    #allocation3 [shape = 's32[1]{0}', space=sflag, size = 0x4, scoped, tag = 'scoped memory for tpu_custom_call.1']
    #allocation4 [shape = 's32[1]{0}', space=sflag, size = 0x4, scoped, tag = 'scoped memory for tpu_custom_call.1']
    #allocation5 [shape = 'u8[32768]{0}', space=vmem, size = 0x8000, scoped, tag = 'input window, operand 1, single buffered']
    #allocation6 [shape = 's32[1]{0}', space=sflag, size = 0x4, scoped, tag = 'scoped memory for tpu_custom_call.1']
    #allocation7 [shape = 'u8[32768]{0}', space=vmem, size = 0x8000, scoped, tag = 'input window, operand 3, single buffered']
    #allocation8 [shape = 'u8[32768]{0}', space=vmem, size = 0x8000, scoped, tag = 'input window, operand 5, single buffered']
    #allocation9 [shape = 's32[1]{0}', space=sflag, size = 0x4, scoped, tag = 'scoped memory for tpu_custom_call.1']
    #allocation10 [shape = 'u8[16384]{0}', space=vmem, size = 0x4000, scoped, tag = 'output window, operand 0, single buffered']
    %12 = vsyncpa [#allocation3], 0
    %13 = vsyncpa [#allocation6], 0
    %14 = vsyncpa [#allocation9], 0
    %15 = vsyncpa [#allocation4], 0
    // Predicated region
    $region2: #{tpu_custom_call.1} parent=1 // pred_check
      _
    $region3: #{tpu_custom_call.1} parent=1 // pred_check_branch
      %17 = sbr.rel (0) target = $region5
    $region4: #{tpu_custom_call.1} parent=1 // pred_region
      %s19 = ssub.s32 512, 512
      %20 = vsyncadd [#allocation3], %s19
      %s21 = sshll.u32 [#allocation2], 4
      %s22 = int_to_ptr.vmem [resolvable:$true] %s21
      %27 = dma.hbm_to_vmem [thread:$0]  %s0, 512, %s22, [#allocation3], 64, 64, 4
    $region5: #{tpu_custom_call.1} parent=1 // pred_fallthru
      _
    // Predicated region
    $region6: #{tpu_custom_call.1} parent=1 // pred_check
      _
    $region7: #{tpu_custom_call.1} parent=1 // pred_check_branch
      %29 = sbr.rel (0) target = $region9
    $region8: #{tpu_custom_call.1} parent=1 // pred_region
      %s31 = ssub.s32 1024, 1024
      %32 = vsyncadd [#allocation6], %s31
      %s33 = sshll.u32 [#allocation5], 4
      %s34 = int_to_ptr.vmem [resolvable:$true] %s33
      %39 = dma.hbm_to_vmem [thread:$0]  %s1, 1024, %s34, [#allocation6], 64, 64, 4
    $region9: #{tpu_custom_call.1} parent=1 // pred_fallthru
      _
    // Predicated region
    $region10: #{tpu_custom_call.1} parent=1 // pred_check
      _
    $region11: #{tpu_custom_call.1} parent=1 // pred_check_branch
      %41 = sbr.rel (0) target = $region13
    $region12: #{tpu_custom_call.1} parent=1 // pred_region
      _
    $region13: #{tpu_custom_call.1} parent=1 // pred_fallthru
      _
    // Predicated region
    $region14: #{tpu_custom_call.1} parent=1 // pred_check
      _
    $region15: #{tpu_custom_call.1} parent=1 // pred_check_branch
      %43 = sbr.rel (0) target = $region17
    $region16: #{tpu_custom_call.1} parent=1 // pred_region
      %s45 = ssub.s32 1024, 1024
      %46 = vsyncadd [#allocation6], %s45
      %s47 = sshll.u32 [#allocation7], 4
      %s48 = int_to_ptr.vmem [resolvable:$true] %s47
      %53 = dma.hbm_to_vmem [thread:$0]  %s3, 1024, %s48, [#allocation6], 64, 64, 4
    $region17: #{tpu_custom_call.1} parent=1 // pred_fallthru
      _
    // Predicated region
    $region18: #{tpu_custom_call.1} parent=1 // pred_check
      _
    $region19: #{tpu_custom_call.1} parent=1 // pred_check_branch
      %55 = sbr.rel (0) target = $region21
    $region20: #{tpu_custom_call.1} parent=1 // pred_region
      _
    $region21: #{tpu_custom_call.1} parent=1 // pred_fallthru
      _
    // Predicated region
    $region22: #{tpu_custom_call.1} parent=1 // pred_check
      _
    $region23: #{tpu_custom_call.1} parent=1 // pred_check_branch
      %57 = sbr.rel (0) target = $region25
    $region24: #{tpu_custom_call.1} parent=1 // pred_region
      %s59 = ssub.s32 1024, 1024
      %60 = vsyncadd [#allocation9], %s59
      %s61 = sshll.u32 [#allocation8], 4
      %s62 = int_to_ptr.vmem [resolvable:$true] %s61
      %67 = dma.hbm_to_vmem [thread:$0]  %s5, 1024, %s62, [#allocation9], 64, 64, 4
    $region25: #{tpu_custom_call.1} parent=1 // pred_fallthru
      _
    // Predicated region
    $region26: #{tpu_custom_call.1} parent=1 // pred_check
      _
    $region27: #{tpu_custom_call.1} parent=1 // pred_check_branch
      %69 = sbr.rel (0) target = $region29
    $region28: #{tpu_custom_call.1} parent=1 // pred_region
      _
    $region29: #{tpu_custom_call.1} parent=1 // pred_fallthru
      _
    // Predicated region
    $region30: #{tpu_custom_call.1} parent=1 // pred_check
      _
    $region31: #{tpu_custom_call.1} parent=1 // pred_check_branch
      %71 = sbr.rel (0) target = $region33
    $region32: #{tpu_custom_call.1} parent=1 // pred_region
      %72 = dma.done [#allocation3], 512
    $region33: #{tpu_custom_call.1} parent=1 // pred_fallthru
      _
    // Predicated region
    $region34: #{tpu_custom_call.1} parent=1 // pred_check
      _
    $region35: #{tpu_custom_call.1} parent=1 // pred_check_branch
      %74 = sbr.rel (0) target = $region37
    $region36: #{tpu_custom_call.1} parent=1 // pred_region
      %75 = dma.done [#allocation6], 1024
    $region37: #{tpu_custom_call.1} parent=1 // pred_fallthru
      _
    // Predicated region
    $region38: #{tpu_custom_call.1} parent=1 // pred_check
      _
    $region39: #{tpu_custom_call.1} parent=1 // pred_check_branch
      %77 = sbr.rel (0) target = $region41
    $region40: #{tpu_custom_call.1} parent=1 // pred_region
      %78 = dma.done [#allocation6], 1024
    $region41: #{tpu_custom_call.1} parent=1 // pred_fallthru
      _
    // Predicated region
    $region42: #{tpu_custom_call.1} parent=1 // pred_check
      _
    $region43: #{tpu_custom_call.1} parent=1 // pred_check_branch
      %80 = sbr.rel (0) target = $region45
    $region44: #{tpu_custom_call.1} parent=1 // pred_region
      %81 = dma.done [#allocation9], 1024
    $region45: #{tpu_custom_call.1} parent=1 // pred_fallthru
      _
    %v83 = vld [vmem:[#allocation2] sm:$0xf]
    %v84 = vld [vmem:[#allocation2 + $0x4] sm:$0xf]
    %v85 = vld [vmem:[#allocation2 + $0x8] sm:$0xf]
    %v86 = vld [vmem:[#allocation2 + $0xc] sm:$0xf]
    %v87 = vld [vmem:[#allocation2 + $0x10] sm:$0xf]
    %v88 = vld [vmem:[#allocation2 + $0x14] sm:$0xf]
    %v89 = vld [vmem:[#allocation2 + $0x18] sm:$0xf]
    %v90 = vld [vmem:[#allocation2 + $0x1c] sm:$0xf]
    %v91 = vld [vmem:[#allocation5] sm:$0xf]
    %v92 = vld [vmem:[#allocation5 + $0x4] sm:$0xf]
    %v93 = vld [vmem:[#allocation5 + $0x8] sm:$0xf]
    %v94 = vld [vmem:[#allocation5 + $0xc] sm:$0xf]
    %v95 = vld [vmem:[#allocation5 + $0x10] sm:$0xf]
    %v96 = vld [vmem:[#allocation5 + $0x14] sm:$0xf]
    %v97 = vld [vmem:[#allocation5 + $0x18] sm:$0xf]
    %v98 = vld [vmem:[#allocation5 + $0x1c] sm:$0xf]
    %v99 = vld [vmem:[#allocation5 + $0x20] sm:$0xf]
    %v100 = vld [vmem:[#allocation5 + $0x24] sm:$0xf]
    %v101 = vld [vmem:[#allocation5 + $0x28] sm:$0xf]
    %v102 = vld [vmem:[#allocation5 + $0x2c] sm:$0xf]
    %v103 = vld [vmem:[#allocation5 + $0x30] sm:$0xf]
    %v104 = vld [vmem:[#allocation5 + $0x34] sm:$0xf]
    %v105 = vld [vmem:[#allocation5 + $0x38] sm:$0xf]
    %v106 = vld [vmem:[#allocation5 + $0x3c] sm:$0xf]
    %v107 = vld [vmem:[%s2] sm:$0x1]
    %v109 = vlaneseq
    %v110 = vshrl.u32 %v109, 7
    %v111 = vsub.s32 0, %v110
    %v112 = vrot.slane %v107, %v111
    %v122 = vunpack.c.l.b16 %v83
    %v123 = vunpack.c.l.b16 %v84
    %v124 = vunpack.c.l.b16 %v85
    %v125 = vunpack.c.l.b16 %v86
    %v126 = vunpack.c.l.b16 %v87
    %v127 = vunpack.c.l.b16 %v88
    %v128 = vunpack.c.l.b16 %v89
    %v129 = vunpack.c.l.b16 %v90
    %v130 = vpack.c.b16 %v123, %v122
    %v131 = vpack.c.b16 %v125, %v124
    %v132 = vpack.c.b16 %v127, %v126
    %v133 = vpack.c.b16 %v129, %v128
    %v154 = vunpack.c.l.b16 %v91
    %v155 = vunpack.c.l.b16 %v92
    %v156 = vunpack.c.l.b16 %v93
    %v157 = vunpack.c.l.b16 %v94
    %v158 = vunpack.c.l.b16 %v95
    %v159 = vunpack.c.l.b16 %v96
    %v160 = vunpack.c.l.b16 %v97
    %v161 = vunpack.c.l.b16 %v98
    %v162 = vunpack.c.l.b16 %v99
    %v163 = vunpack.c.l.b16 %v100
    %v164 = vunpack.c.l.b16 %v101
    %v165 = vunpack.c.l.b16 %v102
    %v166 = vunpack.c.l.b16 %v103
    %v167 = vunpack.c.l.b16 %v104
    %v168 = vunpack.c.l.b16 %v105
    %v169 = vunpack.c.l.b16 %v106
    %v170 = vpack.c.b16 %v155, %v154
    %v171 = vpack.c.b16 %v157, %v156
    %v172 = vpack.c.b16 %v159, %v158
    %v173 = vpack.c.b16 %v161, %v160
    %v174 = vpack.c.b16 %v163, %v162
    %v175 = vpack.c.b16 %v165, %v164
    %v176 = vpack.c.b16 %v167, %v166
    %v177 = vpack.c.b16 %v169, %v168
    %186 = vmatprep.subr.bf16.mxu0 0
    %187 = vmatpush1.bf16.msra.mxu0 %v177
    %188 = vmatprep.subr.bf16.mxu0 0
    %189 = vmatpush1.bf16.msra.mxu0 %v176
    %190 = vmatprep.subr.bf16.mxu0 0
    %191 = vmatpush1.bf16.msra.mxu0 %v175
    %192 = vmatprep.subr.bf16.mxu0 0
    %193 = vmatpush1.bf16.msra.mxu0 %v174
    %194 = vmatprep.subr.bf16.mxu0 0
    %195 = vmatpush1.bf16.msra.mxu0 %v173
    %196 = vmatprep.subr.bf16.mxu0 0
    %197 = vmatpush1.bf16.msra.mxu0 %v172
    %198 = vmatprep.subr.bf16.mxu0 0
    %199 = vmatpush1.bf16.msra.mxu0 %v171
    %200 = vmatprep.subr.bf16.mxu0 0
    %201 = vmatpush1.bf16.msra.mxu0 %v170
    %202 = vmatprep.subr.bf16.mxu0 0
    %203 = vmatpush2.bf16.msra.mxu0 0
    %204 = vmatprep.subr.bf16.mxu0 0
    %205 = vmatpush2.bf16.msra.mxu0 0
    %206 = vmatprep.subr.bf16.mxu0 0
    %207 = vmatpush2.bf16.msra.mxu0 0
    %208 = vmatprep.subr.bf16.mxu0 0
    %209 = vmatpush2.bf16.msra.mxu0 0
    %210 = vmatprep.subr.bf16.mxu0 0
    %211 = vmatpush2.bf16.msra.mxu0 0
    %212 = vmatprep.subr.bf16.mxu0 0
    %213 = vmatpush2.bf16.msra.mxu0 0
    %214 = vmatprep.subr.bf16.mxu0 0
    %215 = vmatpush2.bf16.msra.mxu0 0
    %216 = vmatprep.subr.bf16.mxu0 0
    %217 = vmatpush2.bf16.msra.mxu0 0
    %218 = vmatprep.mubr.bf16.mxu0 0
    %219 = vmatmul.mubr.bf16.gmra.mxu0 %v130
    %v220 = vpop.f32.mrf.mxu0
    %v221 = vadd.f32 %v112, %v220
    %v222 = vpop.f32.mrf.mxu0
    %v223 = vpop.f32.mrf.mxu0
    %v224 = vadd.f32 %v112, %v223
    %v225 = vpop.f32.mrf.mxu0
    %226 = vmatprep.mubr.bf16.mxu0 0
    %227 = vmatmul.mubr.bf16.gmra.mxu0 %v131
    %v228 = vpop.f32.mrf.mxu0
    %v229 = vadd.f32 %v112, %v228
    %v230 = vpop.f32.mrf.mxu0
    %v231 = vpop.f32.mrf.mxu0
    %v232 = vadd.f32 %v112, %v231
    %v233 = vpop.f32.mrf.mxu0
    %234 = vmatprep.mubr.bf16.mxu0 0
    %235 = vmatmul.mubr.bf16.gmra.mxu0 %v132
    %v236 = vpop.f32.mrf.mxu0
    %v237 = vadd.f32 %v112, %v236
    %v238 = vpop.f32.mrf.mxu0
    %v239 = vpop.f32.mrf.mxu0
    %v240 = vadd.f32 %v112, %v239
    %v241 = vpop.f32.mrf.mxu0
    %242 = vmatprep.mubr.bf16.mxu0 0
    %243 = vmatmul.mubr.bf16.gmra.mxu0 %v133
    %v244 = vpop.f32.mrf.mxu0
    %v245 = vadd.f32 %v112, %v244
    %v246 = vpop.f32.mrf.mxu0
    %v247 = vpop.f32.mrf.mxu0
    %v248 = vadd.f32 %v112, %v247
    %v249 = vpop.f32.mrf.mxu0
    %250 = vdwg.mxu0
    %v251 = vmul.f32 %v221, 0.1
    %v252 = vmul.f32 %v224, 0.1
    %v253 = vmul.f32 %v229, 0.1
    %v254 = vmul.f32 %v232, 0.1
    %v255 = vmul.f32 %v237, 0.1
    %v256 = vmul.f32 %v240, 0.1
    %v257 = vmul.f32 %v245, 0.1
    %v258 = vmul.f32 %v248, 0.1
    %v259 = vmax.f32 %v221, %v251
    %v260 = vmax.f32 %v224, %v252
    %v261 = vmax.f32 %v229, %v253
    %v262 = vmax.f32 %v232, %v254
    %v263 = vmax.f32 %v237, %v255
    %v264 = vmax.f32 %v240, %v256
    %v265 = vmax.f32 %v245, %v257
    %v266 = vmax.f32 %v248, %v258
    %v267 = vpack.c.bf16 %v260, %v259
    %v268 = vpack.c.bf16 %v262, %v261
    %v269 = vpack.c.bf16 %v264, %v263
    %v270 = vpack.c.bf16 %v266, %v265
    %v271 = vld [vmem:[#allocation7] sm:$0xf]
    %v272 = vld [vmem:[#allocation7 + $0x4] sm:$0xf]
    %v273 = vld [vmem:[#allocation7 + $0x8] sm:$0xf]
    %v274 = vld [vmem:[#allocation7 + $0xc] sm:$0xf]
    %v275 = vld [vmem:[#allocation7 + $0x10] sm:$0xf]
    %v276 = vld [vmem:[#allocation7 + $0x14] sm:$0xf]
    %v277 = vld [vmem:[#allocation7 + $0x18] sm:$0xf]
    %v278 = vld [vmem:[#allocation7 + $0x1c] sm:$0xf]
    %v279 = vld [vmem:[#allocation7 + $0x20] sm:$0xf]
    %v280 = vld [vmem:[#allocation7 + $0x24] sm:$0xf]
    %v281 = vld [vmem:[#allocation7 + $0x28] sm:$0xf]
    %v282 = vld [vmem:[#allocation7 + $0x2c] sm:$0xf]
    %v283 = vld [vmem:[#allocation7 + $0x30] sm:$0xf]
    %v284 = vld [vmem:[#allocation7 + $0x34] sm:$0xf]
    %v285 = vld [vmem:[#allocation7 + $0x38] sm:$0xf]
    %v286 = vld [vmem:[#allocation7 + $0x3c] sm:$0xf]
    %v287 = vld [vmem:[%s4] sm:$0x1]
    %v289 = vlaneseq
    %v290 = vshrl.u32 %v289, 7
    %v291 = vsub.s32 0, %v290
    %v292 = vrot.slane %v287, %v291
    %v310 = vunpack.c.l.b16 %v271
    %v311 = vunpack.c.l.b16 %v272
    %v312 = vunpack.c.l.b16 %v273
    %v313 = vunpack.c.l.b16 %v274
    %v314 = vunpack.c.l.b16 %v275
    %v315 = vunpack.c.l.b16 %v276
    %v316 = vunpack.c.l.b16 %v277
    %v317 = vunpack.c.l.b16 %v278
    %v318 = vunpack.c.l.b16 %v279
    %v319 = vunpack.c.l.b16 %v280
    %v320 = vunpack.c.l.b16 %v281
    %v321 = vunpack.c.l.b16 %v282
    %v322 = vunpack.c.l.b16 %v283
    %v323 = vunpack.c.l.b16 %v284
    %v324 = vunpack.c.l.b16 %v285
    %v325 = vunpack.c.l.b16 %v286
    %v326 = vpack.c.b16 %v311, %v310
    %v327 = vpack.c.b16 %v313, %v312
    %v328 = vpack.c.b16 %v315, %v314
    %v329 = vpack.c.b16 %v317, %v316
    %v330 = vpack.c.b16 %v319, %v318
    %v331 = vpack.c.b16 %v321, %v320
    %v332 = vpack.c.b16 %v323, %v322
    %v333 = vpack.c.b16 %v325, %v324
    %342 = vmatprep.subr.bf16.mxu0 0
    %343 = vmatpush1.bf16.msra.mxu0 %v333
    %344 = vmatprep.subr.bf16.mxu0 0
    %345 = vmatpush1.bf16.msra.mxu0 %v332
    %346 = vmatprep.subr.bf16.mxu0 0
    %347 = vmatpush1.bf16.msra.mxu0 %v331
    %348 = vmatprep.subr.bf16.mxu0 0
    %349 = vmatpush1.bf16.msra.mxu0 %v330
    %350 = vmatprep.subr.bf16.mxu0 0
    %351 = vmatpush1.bf16.msra.mxu0 %v329
    %352 = vmatprep.subr.bf16.mxu0 0
    %353 = vmatpush1.bf16.msra.mxu0 %v328
    %354 = vmatprep.subr.bf16.mxu0 0
    %355 = vmatpush1.bf16.msra.mxu0 %v327
    %356 = vmatprep.subr.bf16.mxu0 0
    %357 = vmatpush1.bf16.msra.mxu0 %v326
    %358 = vmatprep.subr.bf16.mxu0 0
    %359 = vmatpush2.bf16.msra.mxu0 0
    %360 = vmatprep.subr.bf16.mxu0 0
    %361 = vmatpush2.bf16.msra.mxu0 0
    %362 = vmatprep.subr.bf16.mxu0 0
    %363 = vmatpush2.bf16.msra.mxu0 0
    %364 = vmatprep.subr.bf16.mxu0 0
    %365 = vmatpush2.bf16.msra.mxu0 0
    %366 = vmatprep.subr.bf16.mxu0 0
    %367 = vmatpush2.bf16.msra.mxu0 0
    %368 = vmatprep.subr.bf16.mxu0 0
    %369 = vmatpush2.bf16.msra.mxu0 0
    %370 = vmatprep.subr.bf16.mxu0 0
    %371 = vmatpush2.bf16.msra.mxu0 0
    %372 = vmatprep.subr.bf16.mxu0 0
    %373 = vmatpush2.bf16.msra.mxu0 0
    %374 = vmatprep.mubr.bf16.mxu0 0
    %375 = vmatmul.mubr.bf16.gmra.mxu0 %v267
    %v376 = vpop.f32.mrf.mxu0
    %v377 = vadd.f32 %v292, %v376
    %v378 = vpop.f32.mrf.mxu0
    %v379 = vpop.f32.mrf.mxu0
    %v380 = vadd.f32 %v292, %v379
    %v381 = vpop.f32.mrf.mxu0
    %382 = vmatprep.mubr.bf16.mxu0 0
    %383 = vmatmul.mubr.bf16.gmra.mxu0 %v268
    %v384 = vpop.f32.mrf.mxu0
    %v385 = vadd.f32 %v292, %v384
    %v386 = vpop.f32.mrf.mxu0
    %v387 = vpop.f32.mrf.mxu0
    %v388 = vadd.f32 %v292, %v387
    %v389 = vpop.f32.mrf.mxu0
    %390 = vmatprep.mubr.bf16.mxu0 0
    %391 = vmatmul.mubr.bf16.gmra.mxu0 %v269
    %v392 = vpop.f32.mrf.mxu0
    %v393 = vadd.f32 %v292, %v392
    %v394 = vpop.f32.mrf.mxu0
    %v395 = vpop.f32.mrf.mxu0
    %v396 = vadd.f32 %v292, %v395
    %v397 = vpop.f32.mrf.mxu0
    %398 = vmatprep.mubr.bf16.mxu0 0
    %399 = vmatmul.mubr.bf16.gmra.mxu0 %v270
    %v400 = vpop.f32.mrf.mxu0
    %v401 = vadd.f32 %v292, %v400
    %v402 = vpop.f32.mrf.mxu0
    %v403 = vpop.f32.mrf.mxu0
    %v404 = vadd.f32 %v292, %v403
    %v405 = vpop.f32.mrf.mxu0
    %406 = vdwg.mxu0
    %v407 = vmul.f32 %v377, 0.1
    %v408 = vmul.f32 %v380, 0.1
    %v409 = vmul.f32 %v385, 0.1
    %v410 = vmul.f32 %v388, 0.1
    %v411 = vmul.f32 %v393, 0.1
    %v412 = vmul.f32 %v396, 0.1
    %v413 = vmul.f32 %v401, 0.1
    %v414 = vmul.f32 %v404, 0.1
    %v415 = vmax.f32 %v377, %v407
    %v416 = vmax.f32 %v380, %v408
    %v417 = vmax.f32 %v385, %v409
    %v418 = vmax.f32 %v388, %v410
    %v419 = vmax.f32 %v393, %v411
    %v420 = vmax.f32 %v396, %v412
    %v421 = vmax.f32 %v401, %v413
    %v422 = vmax.f32 %v404, %v414
    %v423 = vpack.c.bf16 %v416, %v415
    %v424 = vpack.c.bf16 %v418, %v417
    %v425 = vpack.c.bf16 %v420, %v419
    %v426 = vpack.c.bf16 %v422, %v421
    %v427 = vld [vmem:[#allocation8] sm:$0xf]
    %v428 = vld [vmem:[#allocation8 + $0x4] sm:$0xf]
    %v429 = vld [vmem:[#allocation8 + $0x8] sm:$0xf]
    %v430 = vld [vmem:[#allocation8 + $0xc] sm:$0xf]
    %v431 = vld [vmem:[#allocation8 + $0x10] sm:$0xf]
    %v432 = vld [vmem:[#allocation8 + $0x14] sm:$0xf]
    %v433 = vld [vmem:[#allocation8 + $0x18] sm:$0xf]
    %v434 = vld [vmem:[#allocation8 + $0x1c] sm:$0xf]
    %v435 = vld [vmem:[#allocation8 + $0x20] sm:$0xf]
    %v436 = vld [vmem:[#allocation8 + $0x24] sm:$0xf]
    %v437 = vld [vmem:[#allocation8 + $0x28] sm:$0xf]
    %v438 = vld [vmem:[#allocation8 + $0x2c] sm:$0xf]
    %v439 = vld [vmem:[#allocation8 + $0x30] sm:$0xf]
    %v440 = vld [vmem:[#allocation8 + $0x34] sm:$0xf]
    %v441 = vld [vmem:[#allocation8 + $0x38] sm:$0xf]
    %v442 = vld [vmem:[#allocation8 + $0x3c] sm:$0xf]
    %v443 = vld [vmem:[%s6] sm:$0x1]
    %v445 = vlaneseq
    %v446 = vshrl.u32 %v445, 7
    %v447 = vsub.s32 0, %v446
    %v448 = vrot.slane %v443, %v447
    %v466 = vunpack.c.l.b16 %v427
    %v467 = vunpack.c.l.b16 %v428
    %v468 = vunpack.c.l.b16 %v429
    %v469 = vunpack.c.l.b16 %v430
    %v470 = vunpack.c.l.b16 %v431
    %v471 = vunpack.c.l.b16 %v432
    %v472 = vunpack.c.l.b16 %v433
    %v473 = vunpack.c.l.b16 %v434
    %v474 = vunpack.c.l.b16 %v435
    %v475 = vunpack.c.l.b16 %v436
    %v476 = vunpack.c.l.b16 %v437
    %v477 = vunpack.c.l.b16 %v438
    %v478 = vunpack.c.l.b16 %v439
    %v479 = vunpack.c.l.b16 %v440
    %v480 = vunpack.c.l.b16 %v441
    %v481 = vunpack.c.l.b16 %v442
    %v482 = vpack.c.b16 %v467, %v466
    %v483 = vpack.c.b16 %v469, %v468
    %v484 = vpack.c.b16 %v471, %v470
    %v485 = vpack.c.b16 %v473, %v472
    %v486 = vpack.c.b16 %v475, %v474
    %v487 = vpack.c.b16 %v477, %v476
    %v488 = vpack.c.b16 %v479, %v478
    %v489 = vpack.c.b16 %v481, %v480
    %498 = vmatprep.subr.bf16.mxu0 0
    %499 = vmatpush1.bf16.msra.mxu0 %v489
    %500 = vmatprep.subr.bf16.mxu0 0
    %501 = vmatpush1.bf16.msra.mxu0 %v488
    %502 = vmatprep.subr.bf16.mxu0 0
    %503 = vmatpush1.bf16.msra.mxu0 %v487
    %504 = vmatprep.subr.bf16.mxu0 0
    %505 = vmatpush1.bf16.msra.mxu0 %v486
    %506 = vmatprep.subr.bf16.mxu0 0
    %507 = vmatpush1.bf16.msra.mxu0 %v485
    %508 = vmatprep.subr.bf16.mxu0 0
    %509 = vmatpush1.bf16.msra.mxu0 %v484
    %510 = vmatprep.subr.bf16.mxu0 0
    %511 = vmatpush1.bf16.msra.mxu0 %v483
    %512 = vmatprep.subr.bf16.mxu0 0
    %513 = vmatpush1.bf16.msra.mxu0 %v482
    %514 = vmatprep.subr.bf16.mxu0 0
    %515 = vmatpush2.bf16.msra.mxu0 0
    %516 = vmatprep.subr.bf16.mxu0 0
    %517 = vmatpush2.bf16.msra.mxu0 0
    %518 = vmatprep.subr.bf16.mxu0 0
    %519 = vmatpush2.bf16.msra.mxu0 0
    %520 = vmatprep.subr.bf16.mxu0 0
    %521 = vmatpush2.bf16.msra.mxu0 0
    %522 = vmatprep.subr.bf16.mxu0 0
    %523 = vmatpush2.bf16.msra.mxu0 0
    %524 = vmatprep.subr.bf16.mxu0 0
    %525 = vmatpush2.bf16.msra.mxu0 0
    %526 = vmatprep.subr.bf16.mxu0 0
    %527 = vmatpush2.bf16.msra.mxu0 0
    %528 = vmatprep.subr.bf16.mxu0 0
    %529 = vmatpush2.bf16.msra.mxu0 0
    %530 = vmatprep.mubr.bf16.mxu0 0
    %531 = vmatmul.mubr.bf16.gmra.mxu0 %v423
    %v532 = vpop.f32.mrf.mxu0
    %v533 = vadd.f32 %v448, %v532
    %v534 = vpop.f32.mrf.mxu0
    %v535 = vpop.f32.mrf.mxu0
    %v536 = vadd.f32 %v448, %v535
    %v537 = vpop.f32.mrf.mxu0
    %538 = vmatprep.mubr.bf16.mxu0 0
    %539 = vmatmul.mubr.bf16.gmra.mxu0 %v424
    %v540 = vpop.f32.mrf.mxu0
    %v541 = vadd.f32 %v448, %v540
    %v542 = vpop.f32.mrf.mxu0
    %v543 = vpop.f32.mrf.mxu0
    %v544 = vadd.f32 %v448, %v543
    %v545 = vpop.f32.mrf.mxu0
    %546 = vmatprep.mubr.bf16.mxu0 0
    %547 = vmatmul.mubr.bf16.gmra.mxu0 %v425
    %v548 = vpop.f32.mrf.mxu0
    %v549 = vadd.f32 %v448, %v548
    %v550 = vpop.f32.mrf.mxu0
    %v551 = vpop.f32.mrf.mxu0
    %v552 = vadd.f32 %v448, %v551
    %v553 = vpop.f32.mrf.mxu0
    %554 = vmatprep.mubr.bf16.mxu0 0
    %555 = vmatmul.mubr.bf16.gmra.mxu0 %v426
    %v556 = vpop.f32.mrf.mxu0
    %v557 = vadd.f32 %v448, %v556
    %v558 = vpop.f32.mrf.mxu0
    %v559 = vpop.f32.mrf.mxu0
    %v560 = vadd.f32 %v448, %v559
    %v561 = vpop.f32.mrf.mxu0
    %562 = vdwg.mxu0
    %v563 = vmul.f32 %v533, 0.1
    %v564 = vmul.f32 %v536, 0.1
    %v565 = vmul.f32 %v541, 0.1
    %v566 = vmul.f32 %v544, 0.1
    %v567 = vmul.f32 %v549, 0.1
    %v568 = vmul.f32 %v552, 0.1
    %v569 = vmul.f32 %v557, 0.1
    %v570 = vmul.f32 %v560, 0.1
    %v571 = vmax.f32 %v533, %v563
    %v572 = vmax.f32 %v536, %v564
    %v573 = vmax.f32 %v541, %v565
    %v574 = vmax.f32 %v544, %v566
    %v575 = vmax.f32 %v549, %v567
    %v576 = vmax.f32 %v552, %v568
    %v577 = vmax.f32 %v557, %v569
    %v578 = vmax.f32 %v560, %v570
    %v579 = vpack.c.bf16 %v572, %v571
    %v580 = vpack.c.bf16 %v574, %v573
    %v581 = vpack.c.bf16 %v576, %v575
    %v582 = vpack.c.bf16 %v578, %v577
    %v587 = vunpack.c.l.b16 %v579
    %v588 = vunpack.c.h.b16 %v579
    %v589 = vunpack.c.l.b16 %v580
    %v590 = vunpack.c.h.b16 %v580
    %v591 = vunpack.c.l.b16 %v581
    %v592 = vunpack.c.h.b16 %v581
    %v593 = vunpack.c.l.b16 %v582
    %v594 = vunpack.c.h.b16 %v582
    %v595 = vpack.c.b16 %v587, %v587
    %v596 = vpack.c.b16 %v588, %v588
    %v597 = vpack.c.b16 %v589, %v589
    %v598 = vpack.c.b16 %v590, %v590
    %v599 = vpack.c.b16 %v591, %v591
    %v600 = vpack.c.b16 %v592, %v592
    %v601 = vpack.c.b16 %v593, %v593
    %v602 = vpack.c.b16 %v594, %v594
    %611 = vst [vmem:[#allocation10] sm:$0xf] %v595
    %612 = vst [vmem:[#allocation10 + $0x4] sm:$0xf] %v596
    %613 = vst [vmem:[#allocation10 + $0x8] sm:$0xf] %v597
    %614 = vst [vmem:[#allocation10 + $0xc] sm:$0xf] %v598
    %615 = vst [vmem:[#allocation10 + $0x10] sm:$0xf] %v599
    %616 = vst [vmem:[#allocation10 + $0x14] sm:$0xf] %v600
    %617 = vst [vmem:[#allocation10 + $0x18] sm:$0xf] %v601
    %618 = vst [vmem:[#allocation10 + $0x1c] sm:$0xf] %v602
    // Predicated region
    $region46: #{tpu_custom_call.1} parent=1 // pred_check
      _
    $region47: #{tpu_custom_call.1} parent=1 // pred_check_branch
      %620 = sbr.rel (0) target = $region49
    $region48: #{tpu_custom_call.1} parent=1 // pred_region
      %s622 = ssub.s32 512, 512
      %623 = vsyncadd [#allocation4], %s622
      %s624 = sshll.u32 [#allocation10], 4
      %s625 = int_to_ptr.vmem [resolvable:$true] %s624
      %630 = dma.vmem_to_hbm [thread:$0]  %s625, 512, %s7, [#allocation4], 64, 64, 4
    $region49: #{tpu_custom_call.1} parent=1 // pred_fallthru
      _
    // Predicated region
    $region50: #{tpu_custom_call.1} parent=1 // pred_check
      _
    $region51: #{tpu_custom_call.1} parent=1 // pred_check_branch
      %632 = sbr.rel (0) target = $region53
    $region52: #{tpu_custom_call.1} parent=1 // pred_region
      %633 = dma.done [#allocation4], 512
    $region53: #{tpu_custom_call.1} parent=1 // pred_fallthru
      _
    %634 = vsyncpa [#allocation3], 1
    %635 = vsyncpa [#allocation6], 1
    %636 = vsyncpa [#allocation9], 1
    %637 = vsyncpa [#allocation4], 1

</llo_original>
